<compile_context>
chip_gen: v7x
topology: tpu7x:2x2x1
jax: 0.10.0
libtpu: 0.0.40
codegen_flags: <defaults>
</compile_context>

<pallas_src>
import math
import numpy as np
import jax
import jax.numpy as jnp
from jax.experimental import pallas as pl
from jax.experimental.pallas import tpu as pltpu  # noqa: F401  (TPU backend)

NUM_MODALITIES = 3


def _full_spec(shape):
    # whole array as a single VMEM block (no grid)
    return pl.BlockSpec(shape, lambda: (0,) * len(shape))


# ---------------------------------------------------------------------------
# Fused Pallas kernel: entire forward pass in one call
# ---------------------------------------------------------------------------
def _fused_forward_kernel(*refs):
    nm = NUM_MODALITIES
    xs    = refs[0 * nm:1 * nm]   # (N, F_m)   modality inputs
    Ms    = refs[1 * nm:2 * nm]   # (N, F_m)   (U * U[0,:]) @ filters^T (setup)
    bTs   = refs[2 * nm:3 * nm]   # (N, F_m)   graph-conv bias, pre-transposed
    fwTs  = refs[3 * nm:4 * nm]   # (F_m, H_m) fc weight, pre-transposed
    fbs   = refs[4 * nm:5 * nm]   # (1, H_m)   fc bias
    cwTs  = refs[5 * nm:6 * nm]   # (H_m, C)   classifier weight slice, pre-T
    cb      = refs[6 * nm]        # (1, C)     classifier bias
    out_ref = refs[6 * nm + 1]    # (N, C)

    acc = jnp.zeros(out_ref.shape, jnp.float32)
    for m in range(nm):           # unrolled at trace time (3 iterations)
        x = xs[m][...]
        # collapsed graph conv: c[i] = sum_n x[n, i] * M[n, i]   -> (1, F_m)
        c = jnp.sum(x * Ms[m][...], axis=0, keepdims=True)
        # torch.diag((N,1)) broadcast over rows + bias[i, :]
        gc = c + bTs[m][...]                                      # (N, F_m)
        # per-modality fc
        hid = jnp.dot(gc, fwTs[m][...],
                      preferred_element_type=jnp.float32) + fbs[m][...]
        # classifier contribution of this modality (replaces the concat)
        acc = acc + jnp.dot(hid, cwTs[m][...],
                            preferred_element_type=jnp.float32)
    out_ref[...] = acc + cb[...]


def fused_forward(data, static):
    """data: list of 3 (N, F_m) arrays.  static: output of prepare_static_inputs."""
    N = data[0].shape[0]
    nclass = static["cls_b2"].shape[1]
    args = (list(data) + list(static["Ms"]) + list(static["gc_bias_T"])
            + list(static["fc_wT"]) + list(static["fc_b2"])
            + list(static["cls_wT"]) + [static["cls_b2"]])
    return pl.pallas_call(
        _fused_forward_kernel,
        out_shape=jax.ShapeDtypeStruct((N, nclass), jnp.float32),
        in_specs=[_full_spec(a.shape) for a in args],
        out_specs=_full_spec((N, nclass)),
    )(*args)


# ---------------------------------------------------------------------------
# One-time setup precompute (module-state constant folding, plain JAX)
# ---------------------------------------------------------------------------
def prepare_static_inputs(params, Us):
    Ms, bTs, fwTs, fb2s, cwTs = [], [], [], [], []
    cls_wT = jnp.asarray(params["cls_w"], jnp.float32).T      # (sum(nhid), C)
    off = 0
    for m in range(NUM_MODALITIES):
        U = jnp.asarray(Us[m], jnp.float32)
        filt = jnp.asarray(params["gc_filters"][m], jnp.float32)
        Ms.append((U * U[0:1, :]) @ filt.T)                    # (N, F_m)
        bTs.append(jnp.asarray(params["gc_bias"][m], jnp.float32).T)
        w = jnp.asarray(params["fc_w"][m], jnp.float32)        # (H_m, F_m)
        fwTs.append(w.T)                                       # (F_m, H_m)
        fb2s.append(jnp.asarray(params["fc_b"][m], jnp.float32).reshape(1, -1))
        H = w.shape[0]
        cwTs.append(cls_wT[off:off + H, :])                    # (H_m, C)
        off += H
    return dict(Ms=Ms, gc_bias_T=bTs, fc_wT=fwTs, fc_b2=fb2s, cls_wT=cwTs,
                cls_b2=jnp.asarray(params["cls_b"], jnp.float32).reshape(1, -1))


# ---------------------------------------------------------------------------
# Setup glue (plain NumPy / JAX)
# ---------------------------------------------------------------------------
def graph_fourier_transform(adj):
    # TODO(synk): original helper not provided; use the combinatorial
    # Laplacian eigenbasis (U, eigenvalues, L) computed at setup time.
    deg = np.diag(adj.sum(axis=1))
    lap = deg - adj
    eigvals, eigvecs = np.linalg.eigh(lap)
    return eigvecs.astype(np.float32), eigvals.astype(np.float32), lap.astype(np.float32)


def init_params(key, num_vertices, nfeat, nhid, nclass):
    stdv = 1.0 / math.sqrt(num_vertices)
    keys = iter(jax.random.split(key, 3 * 4 + 2))
    gc_filters, gc_bias, fc_w, fc_b = [], [], [], []
    for m in range(3):
        gc_filters.append(jax.random.uniform(
            next(keys), (nfeat[m], num_vertices), minval=-stdv, maxval=stdv,
            dtype=jnp.float32))
        gc_bias.append(jax.random.uniform(
            next(keys), (nfeat[m], num_vertices), minval=-stdv, maxval=stdv,
            dtype=jnp.float32))
        bound = 1.0 / math.sqrt(nfeat[m])
        fc_w.append(jax.random.uniform(
            next(keys), (nhid[m], nfeat[m]), minval=-bound, maxval=bound,
            dtype=jnp.float32))
        fc_b.append(jax.random.uniform(
            next(keys), (nhid[m],), minval=-bound, maxval=bound,
            dtype=jnp.float32))
    bound = 1.0 / math.sqrt(sum(nhid))
    cls_w = jax.random.uniform(next(keys), (nclass, sum(nhid)),
                               minval=-bound, maxval=bound, dtype=jnp.float32)
    cls_b = jax.random.uniform(next(keys), (nclass,),
                               minval=-bound, maxval=bound, dtype=jnp.float32)
    return dict(gc_filters=gc_filters, gc_bias=gc_bias,
                fc_w=fc_w, fc_b=fc_b, cls_w=cls_w, cls_b=cls_b)


# ---------------------------------------------------------------------------
# Pure-JAX reference mimicking the PyTorch per-feature loop (sanity check)
# ---------------------------------------------------------------------------
def _ref_graph_conv(x, U, filt, b):
    N, F = x.shape
    cols = []
    for i in range(F):
        s = x[:, i:i + 1]
        y = U.T @ s
        f = U @ jnp.diag(filt[i, :])
        s_conv = f @ y                                   # (N, 1)
        col = jnp.full((N,), s_conv[0, 0]) + b[i, :]     # torch.diag broadcast
        cols.append(col)
    return jnp.stack(cols, axis=1)


def _ref_forward(data, Us, params):
    hidden = []
    for m in range(3):
        gc = _ref_graph_conv(data[m], Us[m],
                             params["gc_filters"][m], params["gc_bias"][m])
        hidden.append(gc @ params["fc_w"][m].T + params["fc_b"][m])
    feat = jnp.concatenate(hidden, axis=1)
    return feat @ params["cls_w"].T + params["cls_b"]


# ---------------------------------------------------------------------------
if __name__ == "__main__":
    N = 16                      # num_vertices == Nsamples
    nfeat = [8, 8, 8]
    nhid = [8, 8, 8]
    nclass = 27

    key = jax.random.PRNGKey(0)
    k_adj, k_data, k_param = jax.random.split(key, 3)

    # symmetric non-negative adjacency matrices; eigenbasis in NumPy
    adj_keys = jax.random.split(k_adj, 3)
    adjs = []
    for m in range(3):
        r = np.array(jax.random.uniform(adj_keys[m], (N, N), dtype=jnp.float32))
        a = (r + r.T) / 2.0
        np.fill_diagonal(a, 0.0)
        adjs.append(a)
    Us = [jnp.asarray(graph_fourier_transform(a)[0]) for a in adjs]

    data_keys = jax.random.split(k_data, 3)
    data = [jax.random.normal(data_keys[m], (N, nfeat[m]), dtype=jnp.float32)
            for m in range(3)]

    params = init_params(k_param, N, nfeat, nhid, nclass)

    # one-time setup precompute (folds static U/filters into M, pre-transposes)
    static = prepare_static_inputs(params, Us)

    out = fused_forward(data, static)
    out = jax.block_until_ready(out)
    assert out.shape == (N, nclass), out.shape

    ref = _ref_forward(data, Us, params)
    np.testing.assert_allclose(np.asarray(out), np.asarray(ref),
                               rtol=2e-3, atol=2e-3)

    print("KERNEL_OK")
</pallas_src>

<mosaic_0001>
module attributes {stable_mosaic.version = 11 : i64} {
  func.func @_fused_forward_kernel(%arg0: memref<16x8xf32, #tpu.memory_space<vmem>>, %arg1: memref<16x8xf32, #tpu.memory_space<vmem>>, %arg2: memref<16x8xf32, #tpu.memory_space<vmem>>, %arg3: memref<16x8xf32, #tpu.memory_space<vmem>>, %arg4: memref<16x8xf32, #tpu.memory_space<vmem>>, %arg5: memref<16x8xf32, #tpu.memory_space<vmem>>, %arg6: memref<16x8xf32, #tpu.memory_space<vmem>>, %arg7: memref<16x8xf32, #tpu.memory_space<vmem>>, %arg8: memref<16x8xf32, #tpu.memory_space<vmem>>, %arg9: memref<8x8xf32, #tpu.memory_space<vmem>>, %arg10: memref<8x8xf32, #tpu.memory_space<vmem>>, %arg11: memref<8x8xf32, #tpu.memory_space<vmem>>, %arg12: memref<1x8xf32, #tpu.memory_space<vmem>>, %arg13: memref<1x8xf32, #tpu.memory_space<vmem>>, %arg14: memref<1x8xf32, #tpu.memory_space<vmem>>, %arg15: memref<8x27xf32, #tpu.memory_space<vmem>>, %arg16: memref<8x27xf32, #tpu.memory_space<vmem>>, %arg17: memref<8x27xf32, #tpu.memory_space<vmem>>, %arg18: memref<1x27xf32, #tpu.memory_space<vmem>>, %arg19: memref<16x27xf32, #tpu.memory_space<vmem>>) attributes {dimension_semantics = [], scalar_prefetch = 0 : i64, scratch_operands = 0 : i64, tpu.core_type = #tpu.core_type<tc>} {
    %cst = arith.constant 0.000000e+00 : f32
    %0 = vector.broadcast %cst : f32 to vector<16x27xf32>
    %c0 = arith.constant 0 : index
    %c0_0 = arith.constant 0 : index
    %1 = vector.load %arg0[%c0, %c0_0] : memref<16x8xf32, #tpu.memory_space<vmem>>, vector<16x8xf32>
    %c0_1 = arith.constant 0 : index
    %c0_2 = arith.constant 0 : index
    %2 = vector.load %arg3[%c0_1, %c0_2] : memref<16x8xf32, #tpu.memory_space<vmem>>, vector<16x8xf32>
    %3 = arith.mulf %1, %2 : vector<16x8xf32>
    %cst_3 = arith.constant dense<0.000000e+00> : vector<8xf32>
    %4 = vector.multi_reduction <add>, %3, %cst_3 [0] : vector<16x8xf32> to vector<8xf32>
    %5 = vector.shape_cast %4 : vector<8xf32> to vector<1x8xf32>
    %c0_4 = arith.constant 0 : index
    %c0_5 = arith.constant 0 : index
    %6 = vector.load %arg6[%c0_4, %c0_5] : memref<16x8xf32, #tpu.memory_space<vmem>>, vector<16x8xf32>
    %7 = vector.broadcast %5 : vector<1x8xf32> to vector<16x8xf32>
    %8 = arith.addf %7, %6 : vector<16x8xf32>
    %c0_6 = arith.constant 0 : index
    %c0_7 = arith.constant 0 : index
    %9 = vector.load %arg9[%c0_6, %c0_7] : memref<8x8xf32, #tpu.memory_space<vmem>>, vector<8x8xf32>
    %cst_8 = arith.constant dense<0.000000e+00> : vector<16x8xf32>
    %10 = tpu.matmul %8, %9, %cst_8 {dimension_numbers = #tpu.dot_dimension_numbers<[1], [0], [0], [1], [0, 0, 1, 1], [], []>} : vector<16x8xf32>, vector<8x8xf32>, vector<16x8xf32> -> vector<16x8xf32>
    %c0_9 = arith.constant 0 : index
    %c0_10 = arith.constant 0 : index
    %11 = vector.load %arg12[%c0_9, %c0_10] : memref<1x8xf32, #tpu.memory_space<vmem>>, vector<1x8xf32>
    %12 = vector.broadcast %11 : vector<1x8xf32> to vector<16x8xf32>
    %13 = arith.addf %10, %12 : vector<16x8xf32>
    %c0_11 = arith.constant 0 : index
    %c0_12 = arith.constant 0 : index
    %14 = vector.load %arg15[%c0_11, %c0_12] : memref<8x27xf32, #tpu.memory_space<vmem>>, vector<8x27xf32>
    %cst_13 = arith.constant dense<0.000000e+00> : vector<16x27xf32>
    %15 = tpu.matmul %13, %14, %cst_13 {dimension_numbers = #tpu.dot_dimension_numbers<[1], [0], [0], [1], [0, 0, 1, 1], [], []>} : vector<16x8xf32>, vector<8x27xf32>, vector<16x27xf32> -> vector<16x27xf32>
    %16 = arith.addf %0, %15 : vector<16x27xf32>
    %c0_14 = arith.constant 0 : index
    %c0_15 = arith.constant 0 : index
    %17 = vector.load %arg1[%c0_14, %c0_15] : memref<16x8xf32, #tpu.memory_space<vmem>>, vector<16x8xf32>
    %c0_16 = arith.constant 0 : index
    %c0_17 = arith.constant 0 : index
    %18 = vector.load %arg4[%c0_16, %c0_17] : memref<16x8xf32, #tpu.memory_space<vmem>>, vector<16x8xf32>
    %19 = arith.mulf %17, %18 : vector<16x8xf32>
    %cst_18 = arith.constant dense<0.000000e+00> : vector<8xf32>
    %20 = vector.multi_reduction <add>, %19, %cst_18 [0] : vector<16x8xf32> to vector<8xf32>
    %21 = vector.shape_cast %20 : vector<8xf32> to vector<1x8xf32>
    %c0_19 = arith.constant 0 : index
    %c0_20 = arith.constant 0 : index
    %22 = vector.load %arg7[%c0_19, %c0_20] : memref<16x8xf32, #tpu.memory_space<vmem>>, vector<16x8xf32>
    %23 = vector.broadcast %21 : vector<1x8xf32> to vector<16x8xf32>
    %24 = arith.addf %23, %22 : vector<16x8xf32>
    %c0_21 = arith.constant 0 : index
    %c0_22 = arith.constant 0 : index
    %25 = vector.load %arg10[%c0_21, %c0_22] : memref<8x8xf32, #tpu.memory_space<vmem>>, vector<8x8xf32>
    %cst_23 = arith.constant dense<0.000000e+00> : vector<16x8xf32>
    %26 = tpu.matmul %24, %25, %cst_23 {dimension_numbers = #tpu.dot_dimension_numbers<[1], [0], [0], [1], [0, 0, 1, 1], [], []>} : vector<16x8xf32>, vector<8x8xf32>, vector<16x8xf32> -> vector<16x8xf32>
    %c0_24 = arith.constant 0 : index
    %c0_25 = arith.constant 0 : index
    %27 = vector.load %arg13[%c0_24, %c0_25] : memref<1x8xf32, #tpu.memory_space<vmem>>, vector<1x8xf32>
    %28 = vector.broadcast %27 : vector<1x8xf32> to vector<16x8xf32>
    %29 = arith.addf %26, %28 : vector<16x8xf32>
    %c0_26 = arith.constant 0 : index
    %c0_27 = arith.constant 0 : index
    %30 = vector.load %arg16[%c0_26, %c0_27] : memref<8x27xf32, #tpu.memory_space<vmem>>, vector<8x27xf32>
    %cst_28 = arith.constant dense<0.000000e+00> : vector<16x27xf32>
    %31 = tpu.matmul %29, %30, %cst_28 {dimension_numbers = #tpu.dot_dimension_numbers<[1], [0], [0], [1], [0, 0, 1, 1], [], []>} : vector<16x8xf32>, vector<8x27xf32>, vector<16x27xf32> -> vector<16x27xf32>
    %32 = arith.addf %16, %31 : vector<16x27xf32>
    %c0_29 = arith.constant 0 : index
    %c0_30 = arith.constant 0 : index
    %33 = vector.load %arg2[%c0_29, %c0_30] : memref<16x8xf32, #tpu.memory_space<vmem>>, vector<16x8xf32>
    %c0_31 = arith.constant 0 : index
    %c0_32 = arith.constant 0 : index
    %34 = vector.load %arg5[%c0_31, %c0_32] : memref<16x8xf32, #tpu.memory_space<vmem>>, vector<16x8xf32>
    %35 = arith.mulf %33, %34 : vector<16x8xf32>
    %cst_33 = arith.constant dense<0.000000e+00> : vector<8xf32>
    %36 = vector.multi_reduction <add>, %35, %cst_33 [0] : vector<16x8xf32> to vector<8xf32>
    %37 = vector.shape_cast %36 : vector<8xf32> to vector<1x8xf32>
    %c0_34 = arith.constant 0 : index
    %c0_35 = arith.constant 0 : index
    %38 = vector.load %arg8[%c0_34, %c0_35] : memref<16x8xf32, #tpu.memory_space<vmem>>, vector<16x8xf32>
    %39 = vector.broadcast %37 : vector<1x8xf32> to vector<16x8xf32>
    %40 = arith.addf %39, %38 : vector<16x8xf32>
    %c0_36 = arith.constant 0 : index
    %c0_37 = arith.constant 0 : index
    %41 = vector.load %arg11[%c0_36, %c0_37] : memref<8x8xf32, #tpu.memory_space<vmem>>, vector<8x8xf32>
    %cst_38 = arith.constant dense<0.000000e+00> : vector<16x8xf32>
    %42 = tpu.matmul %40, %41, %cst_38 {dimension_numbers = #tpu.dot_dimension_numbers<[1], [0], [0], [1], [0, 0, 1, 1], [], []>} : vector<16x8xf32>, vector<8x8xf32>, vector<16x8xf32> -> vector<16x8xf32>
    %c0_39 = arith.constant 0 : index
    %c0_40 = arith.constant 0 : index
    %43 = vector.load %arg14[%c0_39, %c0_40] : memref<1x8xf32, #tpu.memory_space<vmem>>, vector<1x8xf32>
    %44 = vector.broadcast %43 : vector<1x8xf32> to vector<16x8xf32>
    %45 = arith.addf %42, %44 : vector<16x8xf32>
    %c0_41 = arith.constant 0 : index
    %c0_42 = arith.constant 0 : index
    %46 = vector.load %arg17[%c0_41, %c0_42] : memref<8x27xf32, #tpu.memory_space<vmem>>, vector<8x27xf32>
    %cst_43 = arith.constant dense<0.000000e+00> : vector<16x27xf32>
    %47 = tpu.matmul %45, %46, %cst_43 {dimension_numbers = #tpu.dot_dimension_numbers<[1], [0], [0], [1], [0, 0, 1, 1], [], []>} : vector<16x8xf32>, vector<8x27xf32>, vector<16x27xf32> -> vector<16x27xf32>
    %48 = arith.addf %32, %47 : vector<16x27xf32>
    %c0_44 = arith.constant 0 : index
    %c0_45 = arith.constant 0 : index
    %49 = vector.load %arg18[%c0_44, %c0_45] : memref<1x27xf32, #tpu.memory_space<vmem>>, vector<1x27xf32>
    %50 = vector.broadcast %49 : vector<1x27xf32> to vector<16x27xf32>
    %51 = arith.addf %48, %50 : vector<16x27xf32>
    %c0_46 = arith.constant 0 : index
    %c0_47 = arith.constant 0 : index
    %52 = vector.load %arg19[%c0_46, %c0_47] : memref<16x27xf32, #tpu.memory_space<vmem>>, vector<16x27xf32>
    tpu.vector_store %arg19[%c0_46, %c0_47], %51 {strides = array<i32>} : memref<16x27xf32, #tpu.memory_space<vmem>>, vector<16x27xf32>,
    return
  }
}

</mosaic_0001>

<llo_original>
// kernel: tpu_custom_call.1
$region0: #{tpu_custom_call.1}
  #allocation0 [shape = 'u32[]', space=smem, size = 0x4, offset = 0x4, fixed_abs, tag = 'smem constant byte address 0x4 - core index']
  #allocation1 [shape = 'u32[144,128]{1,0:T(1,128)}', space=vmem, size = 0x12000, scoped, tag = 'internal scratch']
  %s0 = inlined_call_operand.vmem [shape: f32[16,8], index: 0, kind: input, shape index: {}]
  %s1 = inlined_call_operand.vmem [shape: f32[16,8], index: 1, kind: input, shape index: {}]
  %s2 = inlined_call_operand.vmem [shape: f32[16,8], index: 2, kind: input, shape index: {}]
  %s3 = inlined_call_operand.vmem [shape: f32[16,8], index: 3, kind: input, shape index: {}]
  %s4 = inlined_call_operand.vmem [shape: f32[16,8], index: 4, kind: input, shape index: {}]
  %s5 = inlined_call_operand.vmem [shape: f32[16,8], index: 5, kind: input, shape index: {}]
  %s6 = inlined_call_operand.vmem [shape: f32[16,8], index: 6, kind: input, shape index: {}]
  %s7 = inlined_call_operand.vmem [shape: f32[16,8], index: 7, kind: input, shape index: {}]
  %s8 = inlined_call_operand.vmem [shape: f32[16,8], index: 8, kind: input, shape index: {}]
  %s9 = inlined_call_operand.vmem [shape: f32[8,8], index: 9, kind: input, shape index: {}]
  %s10 = inlined_call_operand.vmem [shape: f32[8,8], index: 10, kind: input, shape index: {}]
  %s11 = inlined_call_operand.vmem [shape: f32[8,8], index: 11, kind: input, shape index: {}]
  %s12 = inlined_call_operand.vmem [shape: f32[1,8], index: 12, kind: input, shape index: {}]
  %s13 = inlined_call_operand.vmem [shape: f32[1,8], index: 13, kind: input, shape index: {}]
  %s14 = inlined_call_operand.vmem [shape: f32[1,8], index: 14, kind: input, shape index: {}]
  %s15 = inlined_call_operand.vmem [shape: f32[8,27], index: 15, kind: input, shape index: {}]
  %s16 = inlined_call_operand.vmem [shape: f32[8,27], index: 16, kind: input, shape index: {}]
  %s17 = inlined_call_operand.vmem [shape: f32[8,27], index: 17, kind: input, shape index: {}]
  %s18 = inlined_call_operand.vmem [shape: f32[1,27], index: 18, kind: input, shape index: {}]
  %s19 = inlined_call_operand.hbm [shape: f32[16,27], index: 19, kind: output, shape index: {}]
  %s20 = sld [smem:[#allocation0]]
  $region86: #{tpu_custom_call.1} parent=0
    _
  %s22 = ssub.s32 1, %s20
  %s23 = scalar_select 0, %s22, %s20
  $region1: #{tpu_custom_call.1} parent=0
    #allocation2 [shape = 'u8[8192]{0}', space=vmem, size = 0x2000, scoped, tag = 'output window, operand 0, single buffered']
    #allocation3 [shape = 's32[1]{0}', space=sflag, size = 0x4, scoped, tag = 'scoped memory for tpu_custom_call.1']
    %24 = vsyncpa [#allocation3], 0
    // Predicated region
    $region2: #{tpu_custom_call.1} parent=1 // pred_check
      _
    $region3: #{tpu_custom_call.1} parent=1 // pred_check_branch
      %26 = sbr.rel (0) target = $region5
    $region4: #{tpu_custom_call.1} parent=1 // pred_region
      _
    $region5: #{tpu_custom_call.1} parent=1 // pred_fallthru
      _
    // Predicated region
    $region6: #{tpu_custom_call.1} parent=1 // pred_check
      _
    $region7: #{tpu_custom_call.1} parent=1 // pred_check_branch
      %28 = sbr.rel (0) target = $region9
    $region8: #{tpu_custom_call.1} parent=1 // pred_region
      _
    $region9: #{tpu_custom_call.1} parent=1 // pred_fallthru
      _
    // Predicated region
    $region10: #{tpu_custom_call.1} parent=1 // pred_check
      _
    $region11: #{tpu_custom_call.1} parent=1 // pred_check_branch
      %30 = sbr.rel (0) target = $region13
    $region12: #{tpu_custom_call.1} parent=1 // pred_region
      _
    $region13: #{tpu_custom_call.1} parent=1 // pred_fallthru
      _
    // Predicated region
    $region14: #{tpu_custom_call.1} parent=1 // pred_check
      _
    $region15: #{tpu_custom_call.1} parent=1 // pred_check_branch
      %32 = sbr.rel (0) target = $region17
    $region16: #{tpu_custom_call.1} parent=1 // pred_region
      _
    $region17: #{tpu_custom_call.1} parent=1 // pred_fallthru
      _
    // Predicated region
    $region18: #{tpu_custom_call.1} parent=1 // pred_check
      _
    $region19: #{tpu_custom_call.1} parent=1 // pred_check_branch
      %34 = sbr.rel (0) target = $region21
    $region20: #{tpu_custom_call.1} parent=1 // pred_region
      _
    $region21: #{tpu_custom_call.1} parent=1 // pred_fallthru
      _
    // Predicated region
    $region22: #{tpu_custom_call.1} parent=1 // pred_check
      _
    $region23: #{tpu_custom_call.1} parent=1 // pred_check_branch
      %36 = sbr.rel (0) target = $region25
    $region24: #{tpu_custom_call.1} parent=1 // pred_region
      _
    $region25: #{tpu_custom_call.1} parent=1 // pred_fallthru
      _
    // Predicated region
    $region26: #{tpu_custom_call.1} parent=1 // pred_check
      _
    $region27: #{tpu_custom_call.1} parent=1 // pred_check_branch
      %38 = sbr.rel (0) target = $region29
    $region28: #{tpu_custom_call.1} parent=1 // pred_region
      _
    $region29: #{tpu_custom_call.1} parent=1 // pred_fallthru
      _
    // Predicated region
    $region30: #{tpu_custom_call.1} parent=1 // pred_check
      _
    $region31: #{tpu_custom_call.1} parent=1 // pred_check_branch
      %40 = sbr.rel (0) target = $region33
    $region32: #{tpu_custom_call.1} parent=1 // pred_region
      _
    $region33: #{tpu_custom_call.1} parent=1 // pred_fallthru
      _
    // Predicated region
    $region34: #{tpu_custom_call.1} parent=1 // pred_check
      _
    $region35: #{tpu_custom_call.1} parent=1 // pred_check_branch
      %42 = sbr.rel (0) target = $region37
    $region36: #{tpu_custom_call.1} parent=1 // pred_region
      _
    $region37: #{tpu_custom_call.1} parent=1 // pred_fallthru
      _
    // Predicated region
    $region38: #{tpu_custom_call.1} parent=1 // pred_check
      _
    $region39: #{tpu_custom_call.1} parent=1 // pred_check_branch
      %44 = sbr.rel (0) target = $region41
    $region40: #{tpu_custom_call.1} parent=1 // pred_region
      _
    $region41: #{tpu_custom_call.1} parent=1 // pred_fallthru
      _
    // Predicated region
    $region42: #{tpu_custom_call.1} parent=1 // pred_check
      _
    $region43: #{tpu_custom_call.1} parent=1 // pred_check_branch
      %46 = sbr.rel (0) target = $region45
    $region44: #{tpu_custom_call.1} parent=1 // pred_region
      _
    $region45: #{tpu_custom_call.1} parent=1 // pred_fallthru
      _
    // Predicated region
    $region46: #{tpu_custom_call.1} parent=1 // pred_check
      _
    $region47: #{tpu_custom_call.1} parent=1 // pred_check_branch
      %48 = sbr.rel (0) target = $region49
    $region48: #{tpu_custom_call.1} parent=1 // pred_region
      _
    $region49: #{tpu_custom_call.1} parent=1 // pred_fallthru
      _
    // Predicated region
    $region50: #{tpu_custom_call.1} parent=1 // pred_check
      _
    $region51: #{tpu_custom_call.1} parent=1 // pred_check_branch
      %50 = sbr.rel (0) target = $region53
    $region52: #{tpu_custom_call.1} parent=1 // pred_region
      _
    $region53: #{tpu_custom_call.1} parent=1 // pred_fallthru
      _
    // Predicated region
    $region54: #{tpu_custom_call.1} parent=1 // pred_check
      _
    $region55: #{tpu_custom_call.1} parent=1 // pred_check_branch
      %52 = sbr.rel (0) target = $region57
    $region56: #{tpu_custom_call.1} parent=1 // pred_region
      _
    $region57: #{tpu_custom_call.1} parent=1 // pred_fallthru
      _
    // Predicated region
    $region58: #{tpu_custom_call.1} parent=1 // pred_check
      _
    $region59: #{tpu_custom_call.1} parent=1 // pred_check_branch
      %54 = sbr.rel (0) target = $region61
    $region60: #{tpu_custom_call.1} parent=1 // pred_region
      _
    $region61: #{tpu_custom_call.1} parent=1 // pred_fallthru
      _
    // Predicated region
    $region62: #{tpu_custom_call.1} parent=1 // pred_check
      _
    $region63: #{tpu_custom_call.1} parent=1 // pred_check_branch
      %56 = sbr.rel (0) target = $region65
    $region64: #{tpu_custom_call.1} parent=1 // pred_region
      _
    $region65: #{tpu_custom_call.1} parent=1 // pred_fallthru
      _
    // Predicated region
    $region66: #{tpu_custom_call.1} parent=1 // pred_check
      _
    $region67: #{tpu_custom_call.1} parent=1 // pred_check_branch
      %58 = sbr.rel (0) target = $region69
    $region68: #{tpu_custom_call.1} parent=1 // pred_region
      _
    $region69: #{tpu_custom_call.1} parent=1 // pred_fallthru
      _
    // Predicated region
    $region70: #{tpu_custom_call.1} parent=1 // pred_check
      _
    $region71: #{tpu_custom_call.1} parent=1 // pred_check_branch
      %60 = sbr.rel (0) target = $region73
    $region72: #{tpu_custom_call.1} parent=1 // pred_region
      _
    $region73: #{tpu_custom_call.1} parent=1 // pred_fallthru
      _
    // Predicated region
    $region74: #{tpu_custom_call.1} parent=1 // pred_check
      _
    $region75: #{tpu_custom_call.1} parent=1 // pred_check_branch
      %62 = sbr.rel (0) target = $region77
    $region76: #{tpu_custom_call.1} parent=1 // pred_region
      _
    $region77: #{tpu_custom_call.1} parent=1 // pred_fallthru
      _
    %v63 = vld [vmem:[%s0] sm:$0xff]
    %v64 = vld [vmem:[%s0 + $0x8] sm:$0xff]
    %v65 = vld [vmem:[%s3] sm:$0xff]
    %v66 = vld [vmem:[%s3 + $0x8] sm:$0xff]
    %v67 = vmul.f32 %v63, %v65
    %v68 = vmul.f32 %v64, %v66
    %vm69 = vcmask 64512
    %v70 = vsel %vm69, %v67, 0.0
    %v71 = vsel %vm69, %v68, 0.0
    %v72 = vadd.f32 %v70, %v71
    %v73 = vrot.slane %v72, 4
    %v74 = vadd.f32 %v72, %v73
    %v75 = vrot.slane %v74, 2
    %v76 = vadd.f32 %v74, %v75
    %v77 = vrot.slane %v76, 1
    %v78 = vadd.f32 %v76, %v77
    %v79 = vld [vmem:[%s6] sm:$0xff]
    %v80 = vld [vmem:[%s6 + $0x8] sm:$0xff]
    %v81 = vadd.f32 %v78, %v79
    %v82 = vadd.f32 %v78, %v80
    %v83 = vld [vmem:[%s9] sm:$0xff]
    %v84 = vld [vmem:[%s12] sm:$0x1]
    %v86 = vlaneseq
    %v87 = vshrl.u32 %v86, 7
    %v88 = vsub.s32 0, %v87
    %v89 = vrot.slane %v84, %v88
    %v92 = vsel %vm69, %v81, 0
    %v95 = vsel %vm69, %v82, 0
    %97 = vmatprep.subr.mxu0 0.0
    %98 = vmatpush1.msra.mxu0 %v83
    %99 = vmatprep.subr.mxu0 0.0
    %100 = vmatpush1.msra.mxu0 0.0
    %101 = vmatprep.subr.mxu0 0.0
    %102 = vmatpush1.msra.mxu0 0.0
    %103 = vmatprep.subr.mxu0 0.0
    %104 = vmatpush1.msra.mxu0 0.0
    %105 = vmatprep.subr.mxu0 0.0
    %106 = vmatpush1.msra.mxu0 0.0
    %107 = vmatprep.subr.mxu0 0.0
    %108 = vmatpush1.msra.mxu0 0.0
    %109 = vmatprep.subr.mxu0 0.0
    %110 = vmatpush1.msra.mxu0 0.0
    %111 = vmatprep.subr.mxu0 0.0
    %112 = vmatpush1.msra.mxu0 0.0
    %113 = vmatprep.subr.mxu0 0.0
    %114 = vmatpush1.msra.mxu0 0.0
    %115 = vmatprep.subr.mxu0 0.0
    %116 = vmatpush1.msra.mxu0 0.0
    %117 = vmatprep.subr.mxu0 0.0
    %118 = vmatpush1.msra.mxu0 0.0
    %119 = vmatprep.subr.mxu0 0.0
    %120 = vmatpush1.msra.mxu0 0.0
    %121 = vmatprep.subr.mxu0 0.0
    %122 = vmatpush1.msra.mxu0 0.0
    %123 = vmatprep.subr.mxu0 0.0
    %124 = vmatpush1.msra.mxu0 0.0
    %125 = vmatprep.subr.mxu0 0.0
    %126 = vmatpush1.msra.mxu0 0.0
    %127 = vmatprep.subr.mxu0 0.0
    %128 = vmatpush1.msra.mxu0 0.0
    %129 = vmatprep.subr.mxu0 0.0
    %130 = vmatpush1.msra.mxu0 0.0
    %131 = vmatprep.subr.mxu0 0.0
    %132 = vmatpush1.msra.mxu0 0.0
    %133 = vmatprep.subr.mxu0 0.0
    %134 = vmatpush1.msra.mxu0 0.0
    %135 = vmatprep.subr.mxu0 0.0
    %136 = vmatpush1.msra.mxu0 0.0
    %137 = vmatprep.subr.mxu0 0.0
    %138 = vmatpush1.msra.mxu0 0.0
    %139 = vmatprep.subr.mxu0 0.0
    %140 = vmatpush1.msra.mxu0 0.0
    %141 = vmatprep.subr.mxu0 0.0
    %142 = vmatpush1.msra.mxu0 0.0
    %143 = vmatprep.subr.mxu0 0.0
    %144 = vmatpush1.msra.mxu0 0.0
    %145 = vmatprep.subr.mxu0 0.0
    %146 = vmatpush1.msra.mxu0 0.0
    %147 = vmatprep.subr.mxu0 0.0
    %148 = vmatpush1.msra.mxu0 0.0
    %149 = vmatprep.subr.mxu0 0.0
    %150 = vmatpush1.msra.mxu0 0.0
    %151 = vmatprep.subr.mxu0 0.0
    %152 = vmatpush1.msra.mxu0 0.0
    %153 = vmatprep.subr.mxu0 0.0
    %154 = vmatpush1.msra.mxu0 0.0
    %155 = vmatprep.subr.mxu0 0.0
    %156 = vmatpush1.msra.mxu0 0.0
    %157 = vmatprep.subr.mxu0 0.0
    %158 = vmatpush1.msra.mxu0 0.0
    %159 = vmatprep.subr.mxu0 0.0
    %160 = vmatpush1.msra.mxu0 0.0
    %161 = vmatprep.mubr.f32.mxu0 0.0
    %162 = vmatmul.mubr.f32.gmra.mrb[0].mxu0 %v92
    %v163 = vpop.f32.mrb[0].mxu0
    %v164 = vadd.f32 %v89, %v163
    %v165 = vpop.f32.mrb[0].mxu0
    %166 = vmatprep.mubr.f32.mxu0 0.0
    %167 = vmatmul.mubr.f32.gmra.mrb[0].mxu0 %v95
    %v168 = vpop.f32.mrb[0].mxu0
    %v169 = vadd.f32 %v89, %v168
    %v170 = vpop.f32.mrb[0].mxu0
    %171 = vdwg.mxu0
    %v172 = vld [vmem:[%s15] sm:$0xff]
    %v173 = vld [vmem:[%s1] sm:$0xff]
    %v174 = vld [vmem:[%s1 + $0x8] sm:$0xff]
    %v175 = vld [vmem:[%s4] sm:$0xff]
    %v176 = vld [vmem:[%s4 + $0x8] sm:$0xff]
    %v177 = vmul.f32 %v173, %v175
    %v178 = vmul.f32 %v174, %v176
    %v179 = vsel %vm69, %v177, 0.0
    %v180 = vsel %vm69, %v178, 0.0
    %v181 = vadd.f32 %v179, %v180
    %v182 = vrot.slane %v181, 4
    %v183 = vadd.f32 %v181, %v182
    %v184 = vrot.slane %v183, 2
    %v185 = vadd.f32 %v183, %v184
    %v186 = vrot.slane %v185, 1
    %v187 = vadd.f32 %v185, %v186
    %v188 = vld [vmem:[%s7] sm:$0xff]
    %v189 = vld [vmem:[%s7 + $0x8] sm:$0xff]
    %v190 = vadd.f32 %v187, %v188
    %v191 = vadd.f32 %v187, %v189
    %v192 = vld [vmem:[%s10] sm:$0xff]
    %v193 = vld [vmem:[%s13] sm:$0x1]
    %v195 = vlaneseq
    %v196 = vshrl.u32 %v195, 7
    %v197 = vsub.s32 0, %v196
    %v198 = vrot.slane %v193, %v197
    %v201 = vsel %vm69, %v190, 0
    %v204 = vsel %vm69, %v191, 0
    %206 = vmatprep.subr.mxu0 0.0
    %207 = vmatpush1.msra.mxu0 %v192
    %208 = vmatprep.subr.mxu0 0.0
    %209 = vmatpush1.msra.mxu0 0.0
    %210 = vmatprep.subr.mxu0 0.0
    %211 = vmatpush1.msra.mxu0 0.0
    %212 = vmatprep.subr.mxu0 0.0
    %213 = vmatpush1.msra.mxu0 0.0
    %214 = vmatprep.subr.mxu0 0.0
    %215 = vmatpush1.msra.mxu0 0.0
    %216 = vmatprep.subr.mxu0 0.0
    %217 = vmatpush1.msra.mxu0 0.0
    %218 = vmatprep.subr.mxu0 0.0
    %219 = vmatpush1.msra.mxu0 0.0
    %220 = vmatprep.subr.mxu0 0.0
    %221 = vmatpush1.msra.mxu0 0.0
    %222 = vmatprep.subr.mxu0 0.0
    %223 = vmatpush1.msra.mxu0 0.0
    %224 = vmatprep.subr.mxu0 0.0
    %225 = vmatpush1.msra.mxu0 0.0
    %226 = vmatprep.subr.mxu0 0.0
    %227 = vmatpush1.msra.mxu0 0.0
    %228 = vmatprep.subr.mxu0 0.0
    %229 = vmatpush1.msra.mxu0 0.0
    %230 = vmatprep.subr.mxu0 0.0
    %231 = vmatpush1.msra.mxu0 0.0
    %232 = vmatprep.subr.mxu0 0.0
    %233 = vmatpush1.msra.mxu0 0.0
    %234 = vmatprep.subr.mxu0 0.0
    %235 = vmatpush1.msra.mxu0 0.0
    %236 = vmatprep.subr.mxu0 0.0
    %237 = vmatpush1.msra.mxu0 0.0
    %238 = vmatprep.subr.mxu0 0.0
    %239 = vmatpush1.msra.mxu0 0.0
    %240 = vmatprep.subr.mxu0 0.0
    %241 = vmatpush1.msra.mxu0 0.0
    %242 = vmatprep.subr.mxu0 0.0
    %243 = vmatpush1.msra.mxu0 0.0
    %244 = vmatprep.subr.mxu0 0.0
    %245 = vmatpush1.msra.mxu0 0.0
    %246 = vmatprep.subr.mxu0 0.0
    %247 = vmatpush1.msra.mxu0 0.0
    %248 = vmatprep.subr.mxu0 0.0
    %249 = vmatpush1.msra.mxu0 0.0
    %250 = vmatprep.subr.mxu0 0.0
    %251 = vmatpush1.msra.mxu0 0.0
    %252 = vmatprep.subr.mxu0 0.0
    %253 = vmatpush1.msra.mxu0 0.0
    %254 = vmatprep.subr.mxu0 0.0
    %255 = vmatpush1.msra.mxu0 0.0
    %256 = vmatprep.subr.mxu0 0.0
    %257 = vmatpush1.msra.mxu0 0.0
    %258 = vmatprep.subr.mxu0 0.0
    %259 = vmatpush1.msra.mxu0 0.0
    %260 = vmatprep.subr.mxu0 0.0
    %261 = vmatpush1.msra.mxu0 0.0
    %262 = vmatprep.subr.mxu0 0.0
    %263 = vmatpush1.msra.mxu0 0.0
    %264 = vmatprep.subr.mxu0 0.0
    %265 = vmatpush1.msra.mxu0 0.0
    %266 = vmatprep.subr.mxu0 0.0
    %267 = vmatpush1.msra.mxu0 0.0
    %268 = vmatprep.subr.mxu0 0.0
    %269 = vmatpush1.msra.mxu0 0.0
    %270 = vmatprep.mubr.f32.mxu0 0.0
    %271 = vmatmul.mubr.f32.gmra.mrb[0].mxu0 %v201
    %v272 = vpop.f32.mrb[0].mxu0
    %v273 = vadd.f32 %v198, %v272
    %v274 = vpop.f32.mrb[0].mxu0
    %275 = vmatprep.mubr.f32.mxu0 0.0
    %276 = vmatmul.mubr.f32.gmra.mrb[0].mxu0 %v204
    %v277 = vpop.f32.mrb[0].mxu0
    %v278 = vadd.f32 %v198, %v277
    %v279 = vpop.f32.mrb[0].mxu0
    %280 = vdwg.mxu0
    %v281 = vld [vmem:[%s16] sm:$0xff]
    %v283 = vsel %vm69, %v273, 0
    %v286 = vsel %vm69, %v278, 0
    %288 = vmatprep.subr.mxu0 0.0
    %289 = vmatpush1.msra.mxu0 %v281
    %290 = vmatprep.subr.mxu0 0.0
    %291 = vmatpush1.msra.mxu0 0.0
    %292 = vmatprep.subr.mxu0 0.0
    %293 = vmatpush1.msra.mxu0 0.0
    %294 = vmatprep.subr.mxu0 0.0
    %295 = vmatpush1.msra.mxu0 0.0
    %296 = vmatprep.subr.mxu0 0.0
    %297 = vmatpush1.msra.mxu0 0.0
    %298 = vmatprep.subr.mxu0 0.0
    %299 = vmatpush1.msra.mxu0 0.0
    %300 = vmatprep.subr.mxu0 0.0
    %301 = vmatpush1.msra.mxu0 0.0
    %302 = vmatprep.subr.mxu0 0.0
    %303 = vmatpush1.msra.mxu0 0.0
    %304 = vmatprep.subr.mxu0 0.0
    %305 = vmatpush1.msra.mxu0 0.0
    %306 = vmatprep.subr.mxu0 0.0
    %307 = vmatpush1.msra.mxu0 0.0
    %308 = vmatprep.subr.mxu0 0.0
    %309 = vmatpush1.msra.mxu0 0.0
    %310 = vmatprep.subr.mxu0 0.0
    %311 = vmatpush1.msra.mxu0 0.0
    %312 = vmatprep.subr.mxu0 0.0
    %313 = vmatpush1.msra.mxu0 0.0
    %314 = vmatprep.subr.mxu0 0.0
    %315 = vmatpush1.msra.mxu0 0.0
    %316 = vmatprep.subr.mxu0 0.0
    %317 = vmatpush1.msra.mxu0 0.0
    %318 = vmatprep.subr.mxu0 0.0
    %319 = vmatpush1.msra.mxu0 0.0
    %320 = vmatprep.subr.mxu0 0.0
    %321 = vmatpush1.msra.mxu0 0.0
    %322 = vmatprep.subr.mxu0 0.0
    %323 = vmatpush1.msra.mxu0 0.0
    %324 = vmatprep.subr.mxu0 0.0
    %325 = vmatpush1.msra.mxu0 0.0
    %326 = vmatprep.subr.mxu0 0.0
    %327 = vmatpush1.msra.mxu0 0.0
    %328 = vmatprep.subr.mxu0 0.0
    %329 = vmatpush1.msra.mxu0 0.0
    %330 = vmatprep.subr.mxu0 0.0
    %331 = vmatpush1.msra.mxu0 0.0
    %332 = vmatprep.subr.mxu0 0.0
    %333 = vmatpush1.msra.mxu0 0.0
    %334 = vmatprep.subr.mxu0 0.0
    %335 = vmatpush1.msra.mxu0 0.0
    %336 = vmatprep.subr.mxu0 0.0
    %337 = vmatpush1.msra.mxu0 0.0
    %338 = vmatprep.subr.mxu0 0.0
    %339 = vmatpush1.msra.mxu0 0.0
    %340 = vmatprep.subr.mxu0 0.0
    %341 = vmatpush1.msra.mxu0 0.0
    %342 = vmatprep.subr.mxu0 0.0
    %343 = vmatpush1.msra.mxu0 0.0
    %344 = vmatprep.subr.mxu0 0.0
    %345 = vmatpush1.msra.mxu0 0.0
    %346 = vmatprep.subr.mxu0 0.0
    %347 = vmatpush1.msra.mxu0 0.0
    %348 = vmatprep.subr.mxu0 0.0
    %349 = vmatpush1.msra.mxu0 0.0
    %350 = vmatprep.subr.mxu0 0.0
    %351 = vmatpush1.msra.mxu0 0.0
    %352 = vmatprep.mubr.f32.mxu0 0.0
    %353 = vmatmul.mubr.f32.gmra.mrb[0].mxu0 %v283
    %v354 = vpop.f32.mrb[0].mxu0
    %v355 = vadd.f32 0.0, %v354
    %v356 = vpop.f32.mrb[0].mxu0
    %357 = vmatprep.mubr.f32.mxu0 0.0
    %358 = vmatmul.mubr.f32.gmra.mrb[0].mxu0 %v286
    %v359 = vpop.f32.mrb[0].mxu0
    %v360 = vadd.f32 0.0, %v359
    %v361 = vpop.f32.mrb[0].mxu0
    %362 = vdwg.mxu0
    %v364 = vsel %vm69, %v164, 0
    %v367 = vsel %vm69, %v169, 0
    %369 = vmatprep.subr.mxu0 0.0
    %370 = vmatpush1.msra.mxu0 %v172
    %371 = vmatprep.subr.mxu0 0.0
    %372 = vmatpush1.msra.mxu0 0.0
    %373 = vmatprep.subr.mxu0 0.0
    %374 = vmatpush1.msra.mxu0 0.0
    %375 = vmatprep.subr.mxu0 0.0
    %376 = vmatpush1.msra.mxu0 0.0
    %377 = vmatprep.subr.mxu0 0.0
    %378 = vmatpush1.msra.mxu0 0.0
    %379 = vmatprep.subr.mxu0 0.0
    %380 = vmatpush1.msra.mxu0 0.0
    %381 = vmatprep.subr.mxu0 0.0
    %382 = vmatpush1.msra.mxu0 0.0
    %383 = vmatprep.subr.mxu0 0.0
    %384 = vmatpush1.msra.mxu0 0.0
    %385 = vmatprep.subr.mxu0 0.0
    %386 = vmatpush1.msra.mxu0 0.0
    %387 = vmatprep.subr.mxu0 0.0
    %388 = vmatpush1.msra.mxu0 0.0
    %389 = vmatprep.subr.mxu0 0.0
    %390 = vmatpush1.msra.mxu0 0.0
    %391 = vmatprep.subr.mxu0 0.0
    %392 = vmatpush1.msra.mxu0 0.0
    %393 = vmatprep.subr.mxu0 0.0
    %394 = vmatpush1.msra.mxu0 0.0
    %395 = vmatprep.subr.mxu0 0.0
    %396 = vmatpush1.msra.mxu0 0.0
    %397 = vmatprep.subr.mxu0 0.0
    %398 = vmatpush1.msra.mxu0 0.0
    %399 = vmatprep.subr.mxu0 0.0
    %400 = vmatpush1.msra.mxu0 0.0
    %401 = vmatprep.subr.mxu0 0.0
    %402 = vmatpush1.msra.mxu0 0.0
    %403 = vmatprep.subr.mxu0 0.0
    %404 = vmatpush1.msra.mxu0 0.0
    %405 = vmatprep.subr.mxu0 0.0
    %406 = vmatpush1.msra.mxu0 0.0
    %407 = vmatprep.subr.mxu0 0.0
    %408 = vmatpush1.msra.mxu0 0.0
    %409 = vmatprep.subr.mxu0 0.0
    %410 = vmatpush1.msra.mxu0 0.0
    %411 = vmatprep.subr.mxu0 0.0
    %412 = vmatpush1.msra.mxu0 0.0
    %413 = vmatprep.subr.mxu0 0.0
    %414 = vmatpush1.msra.mxu0 0.0
    %415 = vmatprep.subr.mxu0 0.0
    %416 = vmatpush1.msra.mxu0 0.0
    %417 = vmatprep.subr.mxu0 0.0
    %418 = vmatpush1.msra.mxu0 0.0
    %419 = vmatprep.subr.mxu0 0.0
    %420 = vmatpush1.msra.mxu0 0.0
    %421 = vmatprep.subr.mxu0 0.0
    %422 = vmatpush1.msra.mxu0 0.0
    %423 = vmatprep.subr.mxu0 0.0
    %424 = vmatpush1.msra.mxu0 0.0
    %425 = vmatprep.subr.mxu0 0.0
    %426 = vmatpush1.msra.mxu0 0.0
    %427 = vmatprep.subr.mxu0 0.0
    %428 = vmatpush1.msra.mxu0 0.0
    %429 = vmatprep.subr.mxu0 0.0
    %430 = vmatpush1.msra.mxu0 0.0
    %431 = vmatprep.subr.mxu0 0.0
    %432 = vmatpush1.msra.mxu0 0.0
    %433 = vmatprep.mubr.f32.mxu0 0.0
    %434 = vmatmul.mubr.f32.gmra.mrb[0].mxu0 %v364
    %v435 = vpop.f32.mrb[0].mxu0
    %v436 = vadd.f32 %v355, %v435
    %v437 = vpop.f32.mrb[0].mxu0
    %438 = vmatprep.mubr.f32.mxu0 0.0
    %439 = vmatmul.mubr.f32.gmra.mrb[0].mxu0 %v367
    %v440 = vpop.f32.mrb[0].mxu0
    %v441 = vadd.f32 %v360, %v440
    %v442 = vpop.f32.mrb[0].mxu0
    %443 = vdwg.mxu0
    %v444 = vld [vmem:[%s2] sm:$0xff]
    %v445 = vld [vmem:[%s2 + $0x8] sm:$0xff]
    %v446 = vld [vmem:[%s5] sm:$0xff]
    %v447 = vld [vmem:[%s5 + $0x8] sm:$0xff]
    %v448 = vmul.f32 %v444, %v446
    %v449 = vmul.f32 %v445, %v447
    %v450 = vsel %vm69, %v448, 0.0
    %v451 = vsel %vm69, %v449, 0.0
    %v452 = vadd.f32 %v450, %v451
    %v453 = vrot.slane %v452, 4
    %v454 = vadd.f32 %v452, %v453
    %v455 = vrot.slane %v454, 2
    %v456 = vadd.f32 %v454, %v455
    %v457 = vrot.slane %v456, 1
    %v458 = vadd.f32 %v456, %v457
    %v459 = vld [vmem:[%s8] sm:$0xff]
    %v460 = vld [vmem:[%s8 + $0x8] sm:$0xff]
    %v461 = vadd.f32 %v458, %v459
    %v462 = vadd.f32 %v458, %v460
    %v463 = vld [vmem:[%s11] sm:$0xff]
    %v464 = vld [vmem:[%s14] sm:$0x1]
    %v466 = vlaneseq
    %v467 = vshrl.u32 %v466, 7
    %v468 = vsub.s32 0, %v467
    %v469 = vrot.slane %v464, %v468
    %v472 = vsel %vm69, %v461, 0
    %v475 = vsel %vm69, %v462, 0
    %477 = vmatprep.subr.mxu0 0.0
    %478 = vmatpush1.msra.mxu0 %v463
    %479 = vmatprep.subr.mxu0 0.0
    %480 = vmatpush1.msra.mxu0 0.0
    %481 = vmatprep.subr.mxu0 0.0
    %482 = vmatpush1.msra.mxu0 0.0
    %483 = vmatprep.subr.mxu0 0.0
    %484 = vmatpush1.msra.mxu0 0.0
    %485 = vmatprep.subr.mxu0 0.0
    %486 = vmatpush1.msra.mxu0 0.0
    %487 = vmatprep.subr.mxu0 0.0
    %488 = vmatpush1.msra.mxu0 0.0
    %489 = vmatprep.subr.mxu0 0.0
    %490 = vmatpush1.msra.mxu0 0.0
    %491 = vmatprep.subr.mxu0 0.0
    %492 = vmatpush1.msra.mxu0 0.0
    %493 = vmatprep.subr.mxu0 0.0
    %494 = vmatpush1.msra.mxu0 0.0
    %495 = vmatprep.subr.mxu0 0.0
    %496 = vmatpush1.msra.mxu0 0.0
    %497 = vmatprep.subr.mxu0 0.0
    %498 = vmatpush1.msra.mxu0 0.0
    %499 = vmatprep.subr.mxu0 0.0
    %500 = vmatpush1.msra.mxu0 0.0
    %501 = vmatprep.subr.mxu0 0.0
    %502 = vmatpush1.msra.mxu0 0.0
    %503 = vmatprep.subr.mxu0 0.0
    %504 = vmatpush1.msra.mxu0 0.0
    %505 = vmatprep.subr.mxu0 0.0
    %506 = vmatpush1.msra.mxu0 0.0
    %507 = vmatprep.subr.mxu0 0.0
    %508 = vmatpush1.msra.mxu0 0.0
    %509 = vmatprep.subr.mxu0 0.0
    %510 = vmatpush1.msra.mxu0 0.0
    %511 = vmatprep.subr.mxu0 0.0
    %512 = vmatpush1.msra.mxu0 0.0
    %513 = vmatprep.subr.mxu0 0.0
    %514 = vmatpush1.msra.mxu0 0.0
    %515 = vmatprep.subr.mxu0 0.0
    %516 = vmatpush1.msra.mxu0 0.0
    %517 = vmatprep.subr.mxu0 0.0
    %518 = vmatpush1.msra.mxu0 0.0
    %519 = vmatprep.subr.mxu0 0.0
    %520 = vmatpush1.msra.mxu0 0.0
    %521 = vmatprep.subr.mxu0 0.0
    %522 = vmatpush1.msra.mxu0 0.0
    %523 = vmatprep.subr.mxu0 0.0
    %524 = vmatpush1.msra.mxu0 0.0
    %525 = vmatprep.subr.mxu0 0.0
    %526 = vmatpush1.msra.mxu0 0.0
    %527 = vmatprep.subr.mxu0 0.0
    %528 = vmatpush1.msra.mxu0 0.0
    %529 = vmatprep.subr.mxu0 0.0
    %530 = vmatpush1.msra.mxu0 0.0
    %531 = vmatprep.subr.mxu0 0.0
    %532 = vmatpush1.msra.mxu0 0.0
    %533 = vmatprep.subr.mxu0 0.0
    %534 = vmatpush1.msra.mxu0 0.0
    %535 = vmatprep.subr.mxu0 0.0
    %536 = vmatpush1.msra.mxu0 0.0
    %537 = vmatprep.subr.mxu0 0.0
    %538 = vmatpush1.msra.mxu0 0.0
    %539 = vmatprep.subr.mxu0 0.0
    %540 = vmatpush1.msra.mxu0 0.0
    %541 = vmatprep.mubr.f32.mxu0 0.0
    %542 = vmatmul.mubr.f32.gmra.mrb[0].mxu0 %v472
    %v543 = vpop.f32.mrb[0].mxu0
    %v544 = vadd.f32 %v469, %v543
    %v545 = vpop.f32.mrb[0].mxu0
    %546 = vmatprep.mubr.f32.mxu0 0.0
    %547 = vmatmul.mubr.f32.gmra.mrb[0].mxu0 %v475
    %v548 = vpop.f32.mrb[0].mxu0
    %v549 = vadd.f32 %v469, %v548
    %v550 = vpop.f32.mrb[0].mxu0
    %551 = vdwg.mxu0
    %v552 = vld [vmem:[%s17] sm:$0xff]
    %v554 = vsel %vm69, %v544, 0
    %v557 = vsel %vm69, %v549, 0
    %559 = vmatprep.subr.mxu0 0.0
    %560 = vmatpush1.msra.mxu0 %v552
    %561 = vmatprep.subr.mxu0 0.0
    %562 = vmatpush1.msra.mxu0 0.0
    %563 = vmatprep.subr.mxu0 0.0
    %564 = vmatpush1.msra.mxu0 0.0
    %565 = vmatprep.subr.mxu0 0.0
    %566 = vmatpush1.msra.mxu0 0.0
    %567 = vmatprep.subr.mxu0 0.0
    %568 = vmatpush1.msra.mxu0 0.0
    %569 = vmatprep.subr.mxu0 0.0
    %570 = vmatpush1.msra.mxu0 0.0
    %571 = vmatprep.subr.mxu0 0.0
    %572 = vmatpush1.msra.mxu0 0.0
    %573 = vmatprep.subr.mxu0 0.0
    %574 = vmatpush1.msra.mxu0 0.0
    %575 = vmatprep.subr.mxu0 0.0
    %576 = vmatpush1.msra.mxu0 0.0
    %577 = vmatprep.subr.mxu0 0.0
    %578 = vmatpush1.msra.mxu0 0.0
    %579 = vmatprep.subr.mxu0 0.0
    %580 = vmatpush1.msra.mxu0 0.0
    %581 = vmatprep.subr.mxu0 0.0
    %582 = vmatpush1.msra.mxu0 0.0
    %583 = vmatprep.subr.mxu0 0.0
    %584 = vmatpush1.msra.mxu0 0.0
    %585 = vmatprep.subr.mxu0 0.0
    %586 = vmatpush1.msra.mxu0 0.0
    %587 = vmatprep.subr.mxu0 0.0
    %588 = vmatpush1.msra.mxu0 0.0
    %589 = vmatprep.subr.mxu0 0.0
    %590 = vmatpush1.msra.mxu0 0.0
    %591 = vmatprep.subr.mxu0 0.0
    %592 = vmatpush1.msra.mxu0 0.0
    %593 = vmatprep.subr.mxu0 0.0
    %594 = vmatpush1.msra.mxu0 0.0
    %595 = vmatprep.subr.mxu0 0.0
    %596 = vmatpush1.msra.mxu0 0.0
    %597 = vmatprep.subr.mxu0 0.0
    %598 = vmatpush1.msra.mxu0 0.0
    %599 = vmatprep.subr.mxu0 0.0
    %600 = vmatpush1.msra.mxu0 0.0
    %601 = vmatprep.subr.mxu0 0.0
    %602 = vmatpush1.msra.mxu0 0.0
    %603 = vmatprep.subr.mxu0 0.0
    %604 = vmatpush1.msra.mxu0 0.0
    %605 = vmatprep.subr.mxu0 0.0
    %606 = vmatpush1.msra.mxu0 0.0
    %607 = vmatprep.subr.mxu0 0.0
    %608 = vmatpush1.msra.mxu0 0.0
    %609 = vmatprep.subr.mxu0 0.0
    %610 = vmatpush1.msra.mxu0 0.0
    %611 = vmatprep.subr.mxu0 0.0
    %612 = vmatpush1.msra.mxu0 0.0
    %613 = vmatprep.subr.mxu0 0.0
    %614 = vmatpush1.msra.mxu0 0.0
    %615 = vmatprep.subr.mxu0 0.0
    %616 = vmatpush1.msra.mxu0 0.0
    %617 = vmatprep.subr.mxu0 0.0
    %618 = vmatpush1.msra.mxu0 0.0
    %619 = vmatprep.subr.mxu0 0.0
    %620 = vmatpush1.msra.mxu0 0.0
    %621 = vmatprep.subr.mxu0 0.0
    %622 = vmatpush1.msra.mxu0 0.0
    %623 = vmatprep.mubr.f32.mxu0 0.0
    %624 = vmatmul.mubr.f32.gmra.mrb[0].mxu0 %v554
    %v625 = vpop.f32.mrb[0].mxu0
    %v626 = vadd.f32 0.0, %v625
    %v627 = vpop.f32.mrb[0].mxu0
    %628 = vmatprep.mubr.f32.mxu0 0.0
    %629 = vmatmul.mubr.f32.gmra.mrb[0].mxu0 %v557
    %v630 = vpop.f32.mrb[0].mxu0
    %v631 = vadd.f32 0.0, %v630
    %v632 = vpop.f32.mrb[0].mxu0
    %633 = vdwg.mxu0
    %v634 = vadd.f32 %v436, %v626
    %v635 = vadd.f32 %v441, %v631
    %v636 = vld [vmem:[%s18] sm:$0x1]
    %v638 = vlaneseq
    %v639 = vshrl.u32 %v638, 7
    %v640 = vsub.s32 0, %v639
    %v641 = vrot.slane %v636, %v640
    %v643 = vadd.f32 %v634, %v641
    %v644 = vadd.f32 %v635, %v641
    %vm645 = vcmask 220160
    %646 = vst.msk [vmem:[#allocation2] sm:$0xff] %vm645, %v643
    %647 = vst.msk [vmem:[#allocation2 + $0x8] sm:$0xff] %vm645, %v644
    // Predicated region
    $region78: #{tpu_custom_call.1} parent=1 // pred_check
      _
    $region79: #{tpu_custom_call.1} parent=1 // pred_check_branch
      %649 = sbr.rel (0) target = $region81
    $region80: #{tpu_custom_call.1} parent=1 // pred_region
      %s651 = ssub.s32 256, 256
      %652 = vsyncadd [#allocation3], %s651
      %s653 = sshll.u32 [#allocation2], 4
      %s654 = int_to_ptr.vmem [resolvable:$true] %s653
      %659 = dma.vmem_to_hbm [thread:$0]  %s654, 256, %s19, [#allocation3], 128, 128, 8
    $region81: #{tpu_custom_call.1} parent=1 // pred_fallthru
      _
    // Predicated region
    $region82: #{tpu_custom_call.1} parent=1 // pred_check
      _
    $region83: #{tpu_custom_call.1} parent=1 // pred_check_branch
      %661 = sbr.rel (0) target = $region85
    $region84: #{tpu_custom_call.1} parent=1 // pred_region
      %662 = dma.done [#allocation3], 256
    $region85: #{tpu_custom_call.1} parent=1 // pred_fallthru
      _
    %663 = vsyncpa [#allocation3], 1

</llo_original>
